<compile_context>
chip_gen: v7x
topology: tpu7x:2x2x1
jax: 0.10.0
libtpu: 0.0.40
codegen_flags: <defaults>
</compile_context>

<pallas_src>
import jax
import jax.numpy as jnp
from jax import lax
from jax.experimental import pallas as pl
from jax.experimental.pallas import tpu as pltpu

_EPS = 1e-12            # torch.nn.functional.normalize default eps (clamps the norm)
_EPS_SQ = _EPS * _EPS   # equivalent clamp on the sum-of-squares for the rsqrt fusion


def _fg_classifier_kernel(x_ref, w_ref, o_ref, wn_ref):
    """Compute one (tm, tn) output tile of x_norm @ w_norm.T.

    Grid = (num_class_tiles, num_batch_tiles), batch axis innermost, so each
    weight tile stays VMEM-resident across all batch tiles; its normalization
    is done once (i == 0) and cached in the wn_ref scratch.
    """
    i = pl.program_id(1)  # batch-tile index (inner / fastest grid axis)

    @pl.when(i == 0)
    def _():
        w = w_ref[...].astype(jnp.float32)                              # (tn, D)
        inv_w = lax.rsqrt(
            jnp.maximum(jnp.sum(w * w, axis=-1, keepdims=True), _EPS_SQ))
        wn_ref[...] = w * inv_w                                         # cached w_norm

    x = x_ref[...].astype(jnp.float32)                                  # (tm, D)
    inv_x = lax.rsqrt(
        jnp.maximum(jnp.sum(x * x, axis=-1, keepdims=True), _EPS_SQ))
    xn = x * inv_x

    # "NT" matmul: contract the last dim of both operands directly on the MXU
    # (no transposed copy of the weight tile is materialized).
    o_ref[...] = lax.dot_general(
        xn, wn_ref[...],
        dimension_numbers=(((1,), (1,)), ((), ())),
        preferred_element_type=jnp.float32,
    ).astype(o_ref.dtype)


def _round_up(a, b):
    return (a + b - 1) // b * b


def fg_classifier_forward(x, weight, *, tm=128, tn=256):
    """x: (B, D) f32, weight: (C, D) f32 -> (B, C) f32 cosine-similarity logits."""
    B, D = x.shape
    C, Dw = weight.shape
    assert D == Dw, "feature dims must match"

    # Lane-dense, (8,128)-aligned tiles; shrink for small problems.
    tm = min(tm, _round_up(B, 8))     # f32 sublane granularity
    tn = min(tn, _round_up(C, 128))   # lane-dense output stores

    Bp = _round_up(B, tm)
    Cp = _round_up(C, tn)

    # Zero-padding is safe: all-zero rows normalize to zero under the eps
    # clamp, and the padded rows/columns are sliced off below.
    if Bp != B:
        x = jnp.pad(x, ((0, Bp - B), (0, 0)))
    if Cp != C:
        weight = jnp.pad(weight, ((0, Cp - C), (0, 0)))

    grid = (Cp // tn, Bp // tm)  # class tiles outer, batch tiles inner

    # Estimated VMEM footprint: double-buffered x/w/out tiles + w_norm scratch.
    vmem_bytes = 4 * (2 * tm * D + 2 * tn * D + 2 * tm * tn + tn * D)
    compiler_kwargs = {}
    if 2 * vmem_bytes > 16 * 1024 * 1024:  # only raise above the smallest default (v5e)
        compiler_kwargs["vmem_limit_bytes"] = min(
            _round_up(2 * vmem_bytes, 1 << 20), 100 * 1024 * 1024)

    out = pl.pallas_call(
        _fg_classifier_kernel,
        out_shape=jax.ShapeDtypeStruct((Bp, Cp), jnp.float32),
        grid_spec=pltpu.PrefetchScalarGridSpec(
            num_scalar_prefetch=0,
            grid=grid,
            in_specs=[
                pl.BlockSpec((tm, D), lambda j, i: (i, 0)),  # x tile (varies fast)
                pl.BlockSpec((tn, D), lambda j, i: (j, 0)),  # w tile (resident over i)
            ],
            out_specs=pl.BlockSpec((tm, tn), lambda j, i: (i, j)),
            scratch_shapes=[pltpu.VMEM((tn, D), jnp.float32)],  # cached w_norm tile
        ),
        compiler_params=pltpu.CompilerParams(
            # Class-tile axis can shard across TensorCores (v7x megacore);
            # batch axis must run in order because of the i == 0 scratch fill.
            dimension_semantics=("parallel", "arbitrary"),
            **compiler_kwargs,
        ),
    )(x, weight)

    return out[:B, :C]


def fg_classifier_ref(x, weight):
    """Pure-JAX reference mirroring the PyTorch forward."""
    xn = x / jnp.maximum(jnp.linalg.norm(x, axis=1, keepdims=True), _EPS)
    wn = weight / jnp.maximum(jnp.linalg.norm(weight, axis=1, keepdims=True), _EPS)
    return xn @ wn.T


if __name__ == "__main__":
    # Small, deterministic shapes consistent with the module:
    #   feature_dim D = 32, num_classes C = 16, batch B = 8
    B, D, C = 8, 32, 16

    key = jax.random.PRNGKey(0)
    kx, kw = jax.random.split(key)
    x = jax.random.normal(kx, (B, D), dtype=jnp.float32)
    # init_center -> self.weight parameter, shape (num_classes, feature_dim)
    init_center = jax.random.normal(kw, (C, D), dtype=jnp.float32)

    out = fg_classifier_forward(x, init_center)
    out = jax.block_until_ready(out)

    ref = fg_classifier_ref(x, init_center)
    assert out.shape == (B, C)
    assert jnp.allclose(out, ref, atol=1e-5, rtol=1e-5), "mismatch vs reference"

    print("KERNEL_OK")
</pallas_src>

<mosaic_0001>
module attributes {stable_mosaic.version = 11 : i64} {
  func.func @_fg_classifier_kernel(%arg0: i32, %arg1: i32, %arg2: memref<8x32xf32, #tpu.memory_space<vmem>>, %arg3: memref<128x32xf32, #tpu.memory_space<vmem>>, %arg4: memref<8x128xf32, #tpu.memory_space<vmem>>, %arg5: memref<128x32xf32, #tpu.memory_space<vmem>>) attributes {dimension_semantics = [#tpu.dimension_semantics<parallel>, #tpu.dimension_semantics<arbitrary>], iteration_bounds = array<i64: 1, 1>, scalar_prefetch = 0 : i64, scratch_operands = 1 : i64, tpu.core_type = #tpu.core_type<tc>, window_params = [{transform_indices = @transform_0, window_bounds = array<i64: 8, 32>}, {transform_indices = @transform_1, window_bounds = array<i64: 128, 32>}, {transform_indices = @transform_2, window_bounds = array<i64: 8, 128>}]} {
    %c0_i32 = arith.constant 0 : i32
    %0 = arith.cmpi eq, %arg1, %c0_i32 : i32
    %1 = arith.extui %0 : i1 to i32
    %c0_i32_0 = arith.constant 0 : i32
    %2 = arith.cmpi ne, %1, %c0_i32_0 : i32
    scf.if %2 {
      %c0_8 = arith.constant 0 : index
      %c0_9 = arith.constant 0 : index
      %15 = vector.load %arg3[%c0_8, %c0_9] : memref<128x32xf32, #tpu.memory_space<vmem>>, vector<128x32xf32>
      %16 = arith.mulf %15, %15 : vector<128x32xf32>
      %cst_10 = arith.constant dense<0.000000e+00> : vector<128xf32>
      %17 = vector.multi_reduction <add>, %16, %cst_10 [1] : vector<128x32xf32> to vector<128xf32>
      %18 = vector.shape_cast %17 : vector<128xf32> to vector<128x1xf32>
      %cst_11 = arith.constant 1.000000e-24 : f32
      %19 = vector.broadcast %cst_11 : f32 to vector<128x1xf32>
      %20 = arith.maximumf %18, %19 : vector<128x1xf32>
      %21 = math.rsqrt %20 : vector<128x1xf32>
      %22 = vector.broadcast %21 : vector<128x1xf32> to vector<128x32xf32>
      %23 = arith.mulf %15, %22 : vector<128x32xf32>
      %c0_12 = arith.constant 0 : index
      %c0_13 = arith.constant 0 : index
      %24 = vector.load %arg5[%c0_12, %c0_13] : memref<128x32xf32, #tpu.memory_space<vmem>>, vector<128x32xf32>
      tpu.vector_store %arg5[%c0_12, %c0_13], %23 {strides = array<i32>} : memref<128x32xf32, #tpu.memory_space<vmem>>, vector<128x32xf32>,
    } else {
    }
    %c0 = arith.constant 0 : index
    %c0_1 = arith.constant 0 : index
    %3 = vector.load %arg2[%c0, %c0_1] : memref<8x32xf32, #tpu.memory_space<vmem>>, vector<8x32xf32>
    %4 = arith.mulf %3, %3 : vector<8x32xf32>
    %cst = arith.constant dense<0.000000e+00> : vector<8xf32>
    %5 = vector.multi_reduction <add>, %4, %cst [1] : vector<8x32xf32> to vector<8xf32>
    %6 = vector.shape_cast %5 : vector<8xf32> to vector<8x1xf32>
    %cst_2 = arith.constant 1.000000e-24 : f32
    %7 = vector.broadcast %cst_2 : f32 to vector<8x1xf32>
    %8 = arith.maximumf %6, %7 : vector<8x1xf32>
    %9 = math.rsqrt %8 : vector<8x1xf32>
    %10 = vector.broadcast %9 : vector<8x1xf32> to vector<8x32xf32>
    %11 = arith.mulf %3, %10 : vector<8x32xf32>
    %c0_3 = arith.constant 0 : index
    %c0_4 = arith.constant 0 : index
    %12 = vector.load %arg5[%c0_3, %c0_4] : memref<128x32xf32, #tpu.memory_space<vmem>>, vector<128x32xf32>
    %cst_5 = arith.constant dense<0.000000e+00> : vector<8x128xf32>
    %13 = tpu.matmul %11, %12, %cst_5 {dimension_numbers = #tpu.dot_dimension_numbers<[1], [1], [0], [0], [0, 0, 1, 0], [], []>} : vector<8x32xf32>, vector<128x32xf32>, vector<8x128xf32> -> vector<8x128xf32>
    %c0_6 = arith.constant 0 : index
    %c0_7 = arith.constant 0 : index
    %14 = vector.load %arg4[%c0_6, %c0_7] : memref<8x128xf32, #tpu.memory_space<vmem>>, vector<8x128xf32>
    tpu.vector_store %arg4[%c0_6, %c0_7], %13 {strides = array<i32>} : memref<8x128xf32, #tpu.memory_space<vmem>>, vector<8x128xf32>,
    return
  }
  func.func @transform_0(%arg0: i32, %arg1: i32) -> (i32, i32) {
    %c0_i32 = arith.constant 0 : i32
    %c0_i32_0 = arith.constant 0 : i32
    return %arg1, %c0_i32 : i32, i32
  }
  func.func @transform_1(%arg0: i32, %arg1: i32) -> (i32, i32) {
    %c0_i32 = arith.constant 0 : i32
    %c0_i32_0 = arith.constant 0 : i32
    return %arg0, %c0_i32 : i32, i32
  }
  func.func @transform_2(%arg0: i32, %arg1: i32) -> (i32, i32) {
    %c0_i32 = arith.constant 0 : i32
    return %arg1, %arg0 : i32, i32
  }
}

</mosaic_0001>

<llo_original>
// kernel: tpu_custom_call.1
$region0: #{tpu_custom_call.1}
  #allocation0 [shape = 'u32[]', space=smem, size = 0x4, offset = 0x4, fixed_abs, tag = 'smem constant byte address 0x4 - core index']
  #allocation1 [shape = 'u32[144,128]{1,0:T(1,128)}', space=vmem, size = 0x12000, scoped, tag = 'internal scratch']
  #allocation2 [shape = 'f32[128,32]{1,0:T(8,128)}', space=vmem, size = 0x10000, scoped, tag = 'scratch operand']
  %s0 = inlined_call_operand.vmem [shape: f32[8,32], index: 0, kind: input, shape index: {}]
  %s1 = inlined_call_operand.vmem [shape: f32[128,32], index: 1, kind: input, shape index: {}]
  %s2 = inlined_call_operand.hbm [shape: f32[8,128], index: 2, kind: output, shape index: {}]
  %s3 = sld [smem:[#allocation0]]
  $region22: #{tpu_custom_call.1} parent=0
    _
  %s5 = ssub.s32 1, %s3
  %s6 = scalar_select 0, %s5, %s3
  $region1: #{tpu_custom_call.1} parent=0
    #allocation3 [shape = 'u8[4096]{0}', space=vmem, size = 0x1000, scoped, tag = 'output window, operand 0, single buffered']
    #allocation4 [shape = 's32[1]{0}', space=sflag, size = 0x4, scoped, tag = 'scoped memory for tpu_custom_call.1']
    %7 = vsyncpa [#allocation4], 0
    // Predicated region
    $region2: #{tpu_custom_call.1} parent=1 // pred_check
      _
    $region3: #{tpu_custom_call.1} parent=1 // pred_check_branch
      %9 = sbr.rel (0) target = $region5
    $region4: #{tpu_custom_call.1} parent=1 // pred_region
      _
    $region5: #{tpu_custom_call.1} parent=1 // pred_fallthru
      _
    // Predicated region
    $region6: #{tpu_custom_call.1} parent=1 // pred_check
      _
    $region7: #{tpu_custom_call.1} parent=1 // pred_check_branch
      %11 = sbr.rel (0) target = $region9
    $region8: #{tpu_custom_call.1} parent=1 // pred_region
      _
    $region9: #{tpu_custom_call.1} parent=1 // pred_fallthru
      _
    %p12 = scmp.eq.s32.totalorder 0, 0
    // Predicated region
    $region10: #{tpu_custom_call.1} parent=1 // pred_check
      %p13 = pneg %p12
    $region11: #{tpu_custom_call.1} parent=1 // pred_check_branch
      %15 = sbr.rel (%p13) target = $region13
    $region12: #{tpu_custom_call.1} parent=1 // pred_region
      %v16 = vld [vmem:[%s1] sm:$0xff]
      %v17 = vld [vmem:[%s1 + $0x8] sm:$0xff]
      %v18 = vld [vmem:[%s1 + $0x10] sm:$0xff]
      %v19 = vld [vmem:[%s1 + $0x18] sm:$0xff]
      %v20 = vld [vmem:[%s1 + $0x20] sm:$0xff]
      %v21 = vld [vmem:[%s1 + $0x28] sm:$0xff]
      %v22 = vld [vmem:[%s1 + $0x30] sm:$0xff]
      %v23 = vld [vmem:[%s1 + $0x38] sm:$0xff]
      %v24 = vld [vmem:[%s1 + $0x40] sm:$0xff]
      %v25 = vld [vmem:[%s1 + $0x48] sm:$0xff]
      %v26 = vld [vmem:[%s1 + $0x50] sm:$0xff]
      %v27 = vld [vmem:[%s1 + $0x58] sm:$0xff]
      %v28 = vld [vmem:[%s1 + $0x60] sm:$0xff]
      %v29 = vld [vmem:[%s1 + $0x68] sm:$0xff]
      %v30 = vld [vmem:[%s1 + $0x70] sm:$0xff]
      %v31 = vld [vmem:[%s1 + $0x78] sm:$0xff]
      %v32 = vmul.f32 %v16, %v16
      %v33 = vmul.f32 %v17, %v17
      %v34 = vmul.f32 %v18, %v18
      %v35 = vmul.f32 %v19, %v19
      %v36 = vmul.f32 %v20, %v20
      %v37 = vmul.f32 %v21, %v21
      %v38 = vmul.f32 %v22, %v22
      %v39 = vmul.f32 %v23, %v23
      %v40 = vmul.f32 %v24, %v24
      %v41 = vmul.f32 %v25, %v25
      %v42 = vmul.f32 %v26, %v26
      %v43 = vmul.f32 %v27, %v27
      %v44 = vmul.f32 %v28, %v28
      %v45 = vmul.f32 %v29, %v29
      %v46 = vmul.f32 %v30, %v30
      %v47 = vmul.f32 %v31, %v31
      %vm48 = vcmask 261120
      %v49 = vsel %vm48, %v32, 0.0
      %50 = vadd.xlane.f32.xlu0 %v49
      %v51 = vpop.xlane.xlu0 %50
      %v52 = vsel %vm48, %v33, 0.0
      %53 = vadd.xlane.f32.xlu0 %v52
      %v54 = vpop.xlane.xlu0 %53
      %v55 = vsel %vm48, %v34, 0.0
      %56 = vadd.xlane.f32.xlu0 %v55
      %v57 = vpop.xlane.xlu0 %56
      %v58 = vsel %vm48, %v35, 0.0
      %59 = vadd.xlane.f32.xlu0 %v58
      %v60 = vpop.xlane.xlu0 %59
      %v61 = vsel %vm48, %v36, 0.0
      %62 = vadd.xlane.f32.xlu0 %v61
      %v63 = vpop.xlane.xlu0 %62
      %v64 = vsel %vm48, %v37, 0.0
      %65 = vadd.xlane.f32.xlu0 %v64
      %v66 = vpop.xlane.xlu0 %65
      %v67 = vsel %vm48, %v38, 0.0
      %68 = vadd.xlane.f32.xlu0 %v67
      %v69 = vpop.xlane.xlu0 %68
      %v70 = vsel %vm48, %v39, 0.0
      %71 = vadd.xlane.f32.xlu0 %v70
      %v72 = vpop.xlane.xlu0 %71
      %v73 = vsel %vm48, %v40, 0.0
      %74 = vadd.xlane.f32.xlu0 %v73
      %v75 = vpop.xlane.xlu0 %74
      %v76 = vsel %vm48, %v41, 0.0
      %77 = vadd.xlane.f32.xlu0 %v76
      %v78 = vpop.xlane.xlu0 %77
      %v79 = vsel %vm48, %v42, 0.0
      %80 = vadd.xlane.f32.xlu0 %v79
      %v81 = vpop.xlane.xlu0 %80
      %v82 = vsel %vm48, %v43, 0.0
      %83 = vadd.xlane.f32.xlu0 %v82
      %v84 = vpop.xlane.xlu0 %83
      %v85 = vsel %vm48, %v44, 0.0
      %86 = vadd.xlane.f32.xlu0 %v85
      %v87 = vpop.xlane.xlu0 %86
      %v88 = vsel %vm48, %v45, 0.0
      %89 = vadd.xlane.f32.xlu0 %v88
      %v90 = vpop.xlane.xlu0 %89
      %v91 = vsel %vm48, %v46, 0.0
      %92 = vadd.xlane.f32.xlu0 %v91
      %v93 = vpop.xlane.xlu0 %92
      %v94 = vsel %vm48, %v47, 0.0
      %95 = vadd.xlane.f32.xlu0 %v94
      %v96 = vpop.xlane.xlu0 %95
      %v97 = vmax.f32 %v51, 1e-24
      %v98 = vmax.f32 %v54, 1e-24
      %v99 = vmax.f32 %v57, 1e-24
      %v100 = vmax.f32 %v60, 1e-24
      %v101 = vmax.f32 %v63, 1e-24
      %v102 = vmax.f32 %v66, 1e-24
      %v103 = vmax.f32 %v69, 1e-24
      %v104 = vmax.f32 %v72, 1e-24
      %v105 = vmax.f32 %v75, 1e-24
      %v106 = vmax.f32 %v78, 1e-24
      %v107 = vmax.f32 %v81, 1e-24
      %v108 = vmax.f32 %v84, 1e-24
      %v109 = vmax.f32 %v87, 1e-24
      %v110 = vmax.f32 %v90, 1e-24
      %v111 = vmax.f32 %v93, 1e-24
      %v112 = vmax.f32 %v96, 1e-24
      %v113 = vrsqrt.pop %v97
      %v114 = vrsqrt.pop %v98
      %v115 = vrsqrt.pop %v99
      %v116 = vrsqrt.pop %v100
      %v117 = vrsqrt.pop %v101
      %v118 = vrsqrt.pop %v102
      %v119 = vrsqrt.pop %v103
      %v120 = vrsqrt.pop %v104
      %v121 = vrsqrt.pop %v105
      %v122 = vrsqrt.pop %v106
      %v123 = vrsqrt.pop %v107
      %v124 = vrsqrt.pop %v108
      %v125 = vrsqrt.pop %v109
      %v126 = vrsqrt.pop %v110
      %v127 = vrsqrt.pop %v111
      %v128 = vrsqrt.pop %v112
      %v129 = vmul.f32 %v16, %v113
      %v130 = vmul.f32 %v17, %v114
      %v131 = vmul.f32 %v18, %v115
      %v132 = vmul.f32 %v19, %v116
      %v133 = vmul.f32 %v20, %v117
      %v134 = vmul.f32 %v21, %v118
      %v135 = vmul.f32 %v22, %v119
      %v136 = vmul.f32 %v23, %v120
      %v137 = vmul.f32 %v24, %v121
      %v138 = vmul.f32 %v25, %v122
      %v139 = vmul.f32 %v26, %v123
      %v140 = vmul.f32 %v27, %v124
      %v141 = vmul.f32 %v28, %v125
      %v142 = vmul.f32 %v29, %v126
      %v143 = vmul.f32 %v30, %v127
      %v144 = vmul.f32 %v31, %v128
      %145 = vst.msk [vmem:[#allocation2] sm:$0xff] %vm48, %v129
      %146 = vst.msk [vmem:[#allocation2 + $0x8] sm:$0xff] %vm48, %v130
      %147 = vst.msk [vmem:[#allocation2 + $0x10] sm:$0xff] %vm48, %v131
      %148 = vst.msk [vmem:[#allocation2 + $0x18] sm:$0xff] %vm48, %v132
      %149 = vst.msk [vmem:[#allocation2 + $0x20] sm:$0xff] %vm48, %v133
      %150 = vst.msk [vmem:[#allocation2 + $0x28] sm:$0xff] %vm48, %v134
      %151 = vst.msk [vmem:[#allocation2 + $0x30] sm:$0xff] %vm48, %v135
      %152 = vst.msk [vmem:[#allocation2 + $0x38] sm:$0xff] %vm48, %v136
      %153 = vst.msk [vmem:[#allocation2 + $0x40] sm:$0xff] %vm48, %v137
      %154 = vst.msk [vmem:[#allocation2 + $0x48] sm:$0xff] %vm48, %v138
      %155 = vst.msk [vmem:[#allocation2 + $0x50] sm:$0xff] %vm48, %v139
      %156 = vst.msk [vmem:[#allocation2 + $0x58] sm:$0xff] %vm48, %v140
      %157 = vst.msk [vmem:[#allocation2 + $0x60] sm:$0xff] %vm48, %v141
      %158 = vst.msk [vmem:[#allocation2 + $0x68] sm:$0xff] %vm48, %v142
      %159 = vst.msk [vmem:[#allocation2 + $0x70] sm:$0xff] %vm48, %v143
      %160 = vst.msk [vmem:[#allocation2 + $0x78] sm:$0xff] %vm48, %v144
    $region13: #{tpu_custom_call.1} parent=1 // pred_fallthru
      _
    %v161 = vld [vmem:[%s0] sm:$0xff]
    %v162 = vmul.f32 %v161, %v161
    %vm163 = vcmask 261120
    %v164 = vsel %vm163, %v162, 0.0
    %165 = vadd.xlane.f32.xlu0 %v164
    %v166 = vpop.xlane.xlu0 %165
    %v167 = vmax.f32 %v166, 1e-24
    %v168 = vrsqrt.pop %v167
    %v169 = vmul.f32 %v161, %v168
    %v170 = vld [vmem:[#allocation2] sm:$0xff]
    %v171 = vld [vmem:[#allocation2 + $0x8] sm:$0xff]
    %v172 = vld [vmem:[#allocation2 + $0x10] sm:$0xff]
    %v173 = vld [vmem:[#allocation2 + $0x18] sm:$0xff]
    %v174 = vld [vmem:[#allocation2 + $0x20] sm:$0xff]
    %v175 = vld [vmem:[#allocation2 + $0x28] sm:$0xff]
    %v176 = vld [vmem:[#allocation2 + $0x30] sm:$0xff]
    %v177 = vld [vmem:[#allocation2 + $0x38] sm:$0xff]
    %v178 = vld [vmem:[#allocation2 + $0x40] sm:$0xff]
    %v179 = vld [vmem:[#allocation2 + $0x48] sm:$0xff]
    %v180 = vld [vmem:[#allocation2 + $0x50] sm:$0xff]
    %v181 = vld [vmem:[#allocation2 + $0x58] sm:$0xff]
    %v182 = vld [vmem:[#allocation2 + $0x60] sm:$0xff]
    %v183 = vld [vmem:[#allocation2 + $0x68] sm:$0xff]
    %v184 = vld [vmem:[#allocation2 + $0x70] sm:$0xff]
    %v185 = vld [vmem:[#allocation2 + $0x78] sm:$0xff]
    %v187 = vsel %vm163, %v169, 0
    %v190 = vsel %vm163, %v170, 0
    %v193 = vsel %vm163, %v171, 0
    %v196 = vsel %vm163, %v172, 0
    %v199 = vsel %vm163, %v173, 0
    %v202 = vsel %vm163, %v174, 0
    %v205 = vsel %vm163, %v175, 0
    %v208 = vsel %vm163, %v176, 0
    %v211 = vsel %vm163, %v177, 0
    %v214 = vsel %vm163, %v178, 0
    %v217 = vsel %vm163, %v179, 0
    %v220 = vsel %vm163, %v180, 0
    %v223 = vsel %vm163, %v181, 0
    %v226 = vsel %vm163, %v182, 0
    %v229 = vsel %vm163, %v183, 0
    %v232 = vsel %vm163, %v184, 0
    %v235 = vsel %vm163, %v185, 0
    %237 = vmatprep.subr.mxu0 0.0
    %238 = vmatpush1.xpose.msra.mxu0 %v190
    %239 = vmatprep.subr.mxu0 0.0
    %240 = vmatpush1.xpose.msra.mxu0 %v193
    %241 = vmatprep.subr.mxu0 0.0
    %242 = vmatpush1.xpose.msra.mxu0 %v196
    %243 = vmatprep.subr.mxu0 0.0
    %244 = vmatpush1.xpose.msra.mxu0 %v199
    %245 = vmatprep.subr.mxu0 0.0
    %246 = vmatpush1.xpose.msra.mxu0 %v202
    %247 = vmatprep.subr.mxu0 0.0
    %248 = vmatpush1.xpose.msra.mxu0 %v205
    %249 = vmatprep.subr.mxu0 0.0
    %250 = vmatpush1.xpose.msra.mxu0 %v208
    %251 = vmatprep.subr.mxu0 0.0
    %252 = vmatpush1.xpose.msra.mxu0 %v211
    %253 = vmatprep.subr.mxu0 0.0
    %254 = vmatpush1.xpose.msra.mxu0 %v214
    %255 = vmatprep.subr.mxu0 0.0
    %256 = vmatpush1.xpose.msra.mxu0 %v217
    %257 = vmatprep.subr.mxu0 0.0
    %258 = vmatpush1.xpose.msra.mxu0 %v220
    %259 = vmatprep.subr.mxu0 0.0
    %260 = vmatpush1.xpose.msra.mxu0 %v223
    %261 = vmatprep.subr.mxu0 0.0
    %262 = vmatpush1.xpose.msra.mxu0 %v226
    %263 = vmatprep.subr.mxu0 0.0
    %264 = vmatpush1.xpose.msra.mxu0 %v229
    %265 = vmatprep.subr.mxu0 0.0
    %266 = vmatpush1.xpose.msra.mxu0 %v232
    %267 = vmatprep.subr.mxu0 0.0
    %268 = vmatpush1.xpose.msra.mxu0 %v235
    %269 = vmatprep.subr.mxu0 0.0
    %270 = vmatpush1.xpose.msra.mxu0 0.0
    %271 = vmatprep.subr.mxu0 0.0
    %272 = vmatpush1.xpose.msra.mxu0 0.0
    %273 = vmatprep.subr.mxu0 0.0
    %274 = vmatpush1.xpose.msra.mxu0 0.0
    %275 = vmatprep.subr.mxu0 0.0
    %276 = vmatpush1.xpose.msra.mxu0 0.0
    %277 = vmatprep.subr.mxu0 0.0
    %278 = vmatpush1.xpose.msra.mxu0 0.0
    %279 = vmatprep.subr.mxu0 0.0
    %280 = vmatpush1.xpose.msra.mxu0 0.0
    %281 = vmatprep.subr.mxu0 0.0
    %282 = vmatpush1.xpose.msra.mxu0 0.0
    %283 = vmatprep.subr.mxu0 0.0
    %284 = vmatpush1.xpose.msra.mxu0 0.0
    %285 = vmatprep.subr.mxu0 0.0
    %286 = vmatpush1.xpose.msra.mxu0 0.0
    %287 = vmatprep.subr.mxu0 0.0
    %288 = vmatpush1.xpose.msra.mxu0 0.0
    %289 = vmatprep.subr.mxu0 0.0
    %290 = vmatpush1.xpose.msra.mxu0 0.0
    %291 = vmatprep.subr.mxu0 0.0
    %292 = vmatpush1.xpose.msra.mxu0 0.0
    %293 = vmatprep.subr.mxu0 0.0
    %294 = vmatpush1.xpose.msra.mxu0 0.0
    %295 = vmatprep.subr.mxu0 0.0
    %296 = vmatpush1.xpose.msra.mxu0 0.0
    %297 = vmatprep.subr.mxu0 0.0
    %298 = vmatpush1.xpose.msra.mxu0 0.0
    %299 = vmatprep.subr.mxu0 0.0
    %300 = vmatpush1.xpose.msra.mxu0 0.0
    %301 = vmatprep.mubr.f32.mxu0 0.0
    %302 = vmatmul.mubr.f32.gmra.mrb[0].mxu0 %v187
    %v303 = vpop.f32.mrb[0].mxu0
    %v304 = vadd.f32 0.0, %v303
    %v305 = vpop.f32.mrb[0].mxu0
    %306 = vdwg.mxu0
    %307 = vst [vmem:[#allocation3] sm:$0xff] %v304
    // Predicated region
    $region14: #{tpu_custom_call.1} parent=1 // pred_check
      _
    $region15: #{tpu_custom_call.1} parent=1 // pred_check_branch
      %309 = sbr.rel (0) target = $region17
    $region16: #{tpu_custom_call.1} parent=1 // pred_region
      %s311 = ssub.s32 128, 128
      %312 = vsyncadd [#allocation4], %s311
      %s314 = sshll.u32 [#allocation3], 4
      %s315 = int_to_ptr.vmem [resolvable:$true] %s314
      %317 = dma.vmem_to_hbm [thread:$0]  %s315, 128, %s2, [#allocation4]
    $region17: #{tpu_custom_call.1} parent=1 // pred_fallthru
      _
    // Predicated region
    $region18: #{tpu_custom_call.1} parent=1 // pred_check
      _
    $region19: #{tpu_custom_call.1} parent=1 // pred_check_branch
      %319 = sbr.rel (0) target = $region21
    $region20: #{tpu_custom_call.1} parent=1 // pred_region
      %320 = dma.done [#allocation4], 128
    $region21: #{tpu_custom_call.1} parent=1 // pred_fallthru
      _
    %321 = vsyncpa [#allocation4], 1

</llo_original>
